<compile_context>
chip_gen: v6e
topology: v6e:2x2x1
jax: 0.10.0
libtpu: 0.0.40
codegen_flags: <defaults>
</compile_context>

<pallas_src>
import functools

import jax
import jax.numpy as jnp
from jax import lax
from jax.experimental import pallas as pl
from jax.experimental.pallas import tpu as pltpu


def _round_up(x, m):
    return (x + m - 1) // m * m


def _gather_rows(ids, table, rows_per_tile, vocab):
    """Exact embedding-row gather as a one-hot f32 MXU matmul.

    ids   : (R, 1) int32
    table : (V, V) f32 (VMEM-resident)
    returns (logits (R, V) f32, col iota (R, V) int32 for reuse)
    """
    col = lax.broadcasted_iota(jnp.int32, (rows_per_tile, vocab), 1)
    one_hot = (col == ids).astype(jnp.float32)          # exact 0/1
    logits = jnp.dot(one_hot, table,
                     preferred_element_type=jnp.float32,
                     precision=lax.Precision.HIGHEST)
    return logits, col


def _ce_row_losses(logits, col, tgts):
    """Per-row NLL: logsumexp(logits) - logits[target]   -> (R, 1) f32."""
    m = jnp.max(logits, axis=-1, keepdims=True)
    lse = m + jnp.log(jnp.sum(jnp.exp(logits - m), axis=-1, keepdims=True))
    picked = jnp.sum(jnp.where(col == tgts, logits, 0.0), axis=-1, keepdims=True)
    return lse - picked


def _logits_kernel(idx_ref, table_ref, logits_ref, *, rows_per_tile, vocab):
    logits, _ = _gather_rows(idx_ref[...], table_ref[...], rows_per_tile, vocab)
    logits_ref[...] = logits


def _ce_kernel(idx_ref, tgt_ref, table_ref, logits_ref, loss_ref,
               *, rows_per_tile, vocab, n_rows):
    i = pl.program_id(0)
    logits, col = _gather_rows(idx_ref[...], table_ref[...], rows_per_tile, vocab)
    logits_ref[...] = logits
    nll = _ce_row_losses(logits, col, tgt_ref[...])
    rows = lax.broadcasted_iota(jnp.int32, (rows_per_tile, 1), 0) + i * rows_per_tile
    loss_ref[...] = jnp.where(rows < n_rows, nll, 0.0)   # mask padded rows


def _ce_loss_only_kernel(idx_ref, tgt_ref, table_ref, loss_ref,
                         *, rows_per_tile, vocab, n_rows):
    i = pl.program_id(0)
    logits, col = _gather_rows(idx_ref[...], table_ref[...], rows_per_tile, vocab)
    nll = _ce_row_losses(logits, col, tgt_ref[...])
    rows = lax.broadcasted_iota(jnp.int32, (rows_per_tile, 1), 0) + i * rows_per_tile
    loss_ref[...] = jnp.where(rows < n_rows, nll, 0.0)


def bigram_forward(table, idx, target=None, *, loss_only=False, rows_per_tile=256):
    """Pallas implementation of BigramLM.forward.

    table : (V, V) float32 embedding table.
    idx   : (B, T) int token ids.
    target: optional (B, T) int token ids.

    Returns (logits, loss):
      - target is None            : logits (B, T, V), loss None.
      - target given              : logits (B*T, V), loss scalar f32.
      - target given, loss_only   : logits None,     loss scalar f32.
    """
    B, T = idx.shape
    V = table.shape[0]
    N = B * T

    # Row tile size: multiple of 8 sublanes, capped at rows_per_tile.
    R = min(_round_up(rows_per_tile, 8), _round_up(N, 8))
    N_pad = _round_up(N, R)
    num_tiles = N_pad // R

    table_f32 = table.astype(jnp.float32)

    # VMEM budget: (double-buffered) resident table + pipelined (R,V) logits
    # tiles + small idx/tgt/loss tiles.
    vmem_needed = 2 * V * V * 4 + 3 * R * V * 4 + 8 * R * 4 + (1 << 20)
    if vmem_needed > 48 * 1024 * 1024:
        # TODO(synk): scalar-prefetch row-gather fallback for very large vocab.
        raise NotImplementedError("vocab too large for the resident-table kernel")
    vmem_limit = int(min(60 * 1024 * 1024, max(32 * 1024 * 1024, 2 * vmem_needed)))
    cparams = pltpu.CompilerParams(
        dimension_semantics=("parallel",),   # no carried state -> fully parallel
        vmem_limit_bytes=vmem_limit)

    def pad_col(x):
        x = x.reshape(-1).astype(jnp.int32)
        return jnp.pad(x, (0, N_pad - N)).reshape(N_pad, 1)

    idx_col = pad_col(idx)

    ids_spec = pl.BlockSpec((R, 1), lambda i: (i, 0))
    table_spec = pl.BlockSpec((V, V), lambda i: (0, 0))     # resident across grid
    logits_spec = pl.BlockSpec((R, V), lambda i: (i, 0))
    loss_spec = pl.BlockSpec((R, 1), lambda i: (i, 0))

    if target is None:
        kernel = functools.partial(_logits_kernel, rows_per_tile=R, vocab=V)
        logits = pl.pallas_call(
            kernel,
            out_shape=jax.ShapeDtypeStruct((N_pad, V), jnp.float32),
            grid_spec=pltpu.PrefetchScalarGridSpec(
                num_scalar_prefetch=0,
                grid=(num_tiles,),
                in_specs=[ids_spec, table_spec],
                out_specs=logits_spec,
            ),
            compiler_params=cparams,
        )(idx_col, table_f32)
        return logits[:N].reshape(B, T, V), None

    tgt_col = pad_col(target)

    if loss_only:
        kernel = functools.partial(_ce_loss_only_kernel,
                                   rows_per_tile=R, vocab=V, n_rows=N)
        loss_rows = pl.pallas_call(
            kernel,
            out_shape=jax.ShapeDtypeStruct((N_pad, 1), jnp.float32),
            grid_spec=pltpu.PrefetchScalarGridSpec(
                num_scalar_prefetch=0,
                grid=(num_tiles,),
                in_specs=[ids_spec, ids_spec, table_spec],
                out_specs=loss_spec,
            ),
            compiler_params=cparams,
        )(idx_col, tgt_col, table_f32)
        return None, jnp.sum(loss_rows) / N

    kernel = functools.partial(_ce_kernel, rows_per_tile=R, vocab=V, n_rows=N)
    logits, loss_rows = pl.pallas_call(
        kernel,
        out_shape=(
            jax.ShapeDtypeStruct((N_pad, V), jnp.float32),
            jax.ShapeDtypeStruct((N_pad, 1), jnp.float32),
        ),
        grid_spec=pltpu.PrefetchScalarGridSpec(
            num_scalar_prefetch=0,
            grid=(num_tiles,),
            in_specs=[ids_spec, ids_spec, table_spec],
            out_specs=(logits_spec, loss_spec),
        ),
        compiler_params=cparams,
    )(idx_col, tgt_col, table_f32)
    loss = jnp.sum(loss_rows) / N
    return logits[:N], loss


if __name__ == "__main__":
    # Small, TPU-friendly sizes: vocab 128 (lane-aligned), batch 2, seq 8.
    vocab_size = 128
    block_size = 8
    B, T = 2, block_size
    N = B * T

    key = jax.random.PRNGKey(0)
    k_tab, k_idx, k_tgt = jax.random.split(key, 3)
    # nn.Embedding default init: N(0, 1).
    table = jax.random.normal(k_tab, (vocab_size, vocab_size), dtype=jnp.float32)
    idx = jax.random.randint(k_idx, (B, T), 0, vocab_size, dtype=jnp.int32)
    target = jax.random.randint(k_tgt, (B, T), 0, vocab_size, dtype=jnp.int32)

    # With target: logits (B*T, V), scalar loss.
    logits, loss = bigram_forward(table, idx, target)
    jax.block_until_ready((logits, loss))

    # Without target: logits (B, T, V), loss None.
    logits_nt, loss_nt = bigram_forward(table, idx, None)
    jax.block_until_ready(logits_nt)
    assert loss_nt is None

    # Loss-only variant (skips logits writeback).
    _, loss_lo = bigram_forward(table, idx, target, loss_only=True)
    jax.block_until_ready(loss_lo)

    # Lightweight correctness check against a pure-JAX reference.
    ref_logits = table[idx.reshape(-1)]                        # (N, V)
    ref_lse = jax.nn.logsumexp(ref_logits, axis=-1)
    ref_loss = jnp.mean(ref_lse - ref_logits[jnp.arange(N), target.reshape(-1)])

    assert logits.shape == (N, vocab_size)
    assert logits_nt.shape == (B, T, vocab_size)
    assert jnp.allclose(logits, ref_logits, atol=1e-4)
    assert jnp.allclose(logits_nt, ref_logits.reshape(B, T, vocab_size), atol=1e-4)
    assert jnp.allclose(loss, ref_loss, atol=1e-4)
    assert jnp.allclose(loss_lo, ref_loss, atol=1e-4)

    print("KERNEL_OK")
</pallas_src>

<mosaic_0001>
module attributes {stable_mosaic.version = 11 : i64} {
  func.func @_ce_kernel(%arg0: i32, %arg1: memref<16x1xi32, #tpu.memory_space<vmem>>, %arg2: memref<16x1xi32, #tpu.memory_space<vmem>>, %arg3: memref<128x128xf32, #tpu.memory_space<vmem>>, %arg4: memref<16x128xf32, #tpu.memory_space<vmem>>, %arg5: memref<16x1xf32, #tpu.memory_space<vmem>>) attributes {dimension_semantics = [#tpu.dimension_semantics<parallel>], iteration_bounds = array<i64: 1>, scalar_prefetch = 0 : i64, scratch_operands = 0 : i64, tpu.core_type = #tpu.core_type<tc>, window_params = [{transform_indices = @transform_0, window_bounds = array<i64: 16, 1>}, {transform_indices = @transform_1, window_bounds = array<i64: 16, 1>}, {pipeline_mode = #tpu.pipeline_mode<synchronous>, transform_indices = @transform_2, window_bounds = array<i64: 128, 128>}, {transform_indices = @transform_3, window_bounds = array<i64: 16, 128>}, {transform_indices = @transform_4, window_bounds = array<i64: 16, 1>}]} {
    %c0 = arith.constant 0 : index
    %c0_0 = arith.constant 0 : index
    %0 = vector.load %arg1[%c0, %c0_0] : memref<16x1xi32, #tpu.memory_space<vmem>>, vector<16x1xi32>
    %c0_1 = arith.constant 0 : index
    %c0_2 = arith.constant 0 : index
    %1 = vector.load %arg3[%c0_1, %c0_2] : memref<128x128xf32, #tpu.memory_space<vmem>>, vector<128x128xf32>
    %2 = tpu.iota {dimensions = array<i32: 1>} : vector<16x128xi32>
    %3 = vector.broadcast %0 : vector<16x1xi32> to vector<16x128xi32>
    %4 = arith.cmpi eq, %2, %3 : vector<16x128xi32>
    %5 = arith.extui %4 : vector<16x128xi1> to vector<16x128xi32>
    %6 = arith.sitofp %5 : vector<16x128xi32> to vector<16x128xf32>
    %cst = arith.constant dense<0.000000e+00> : vector<16x128xf32>
    %7 = tpu.matmul %6, %1, %cst {dimension_numbers = #tpu.dot_dimension_numbers<[1], [0], [0], [1], [0, 0, 1, 1], [], []>, precision = #tpu.contract_precision<fp32>} : vector<16x128xf32>, vector<128x128xf32>, vector<16x128xf32> -> vector<16x128xf32>
    %c0_3 = arith.constant 0 : index
    %c0_4 = arith.constant 0 : index
    %8 = vector.load %arg4[%c0_3, %c0_4] : memref<16x128xf32, #tpu.memory_space<vmem>>, vector<16x128xf32>
    tpu.vector_store %arg4[%c0_3, %c0_4], %7 {strides = array<i32>} : memref<16x128xf32, #tpu.memory_space<vmem>>, vector<16x128xf32>,
    %c0_5 = arith.constant 0 : index
    %c0_6 = arith.constant 0 : index
    %9 = vector.load %arg2[%c0_5, %c0_6] : memref<16x1xi32, #tpu.memory_space<vmem>>, vector<16x1xi32>
    %cst_7 = arith.constant dense<0xFF800000> : vector<16xf32>
    %10 = vector.multi_reduction <maximumf>, %7, %cst_7 [1] : vector<16x128xf32> to vector<16xf32>
    %11 = vector.shape_cast %10 : vector<16xf32> to vector<16x1xf32>
    %12 = vector.broadcast %11 : vector<16x1xf32> to vector<16x128xf32>
    %13 = arith.subf %7, %12 : vector<16x128xf32>
    %14 = math.exp %13 : vector<16x128xf32>
    %cst_8 = arith.constant dense<0.000000e+00> : vector<16xf32>
    %15 = vector.multi_reduction <add>, %14, %cst_8 [1] : vector<16x128xf32> to vector<16xf32>
    %16 = vector.shape_cast %15 : vector<16xf32> to vector<16x1xf32>
    %17 = math.log %16 : vector<16x1xf32>
    %18 = arith.addf %11, %17 : vector<16x1xf32>
    %19 = vector.broadcast %9 : vector<16x1xi32> to vector<16x128xi32>
    %20 = arith.cmpi eq, %2, %19 : vector<16x128xi32>
    %cst_9 = arith.constant 0.000000e+00 : f32
    %21 = vector.broadcast %cst_9 : f32 to vector<16x128xf32>
    %22 = arith.select %20, %7, %21 : vector<16x128xi1>, vector<16x128xf32>
    %cst_10 = arith.constant dense<0.000000e+00> : vector<16xf32>
    %23 = vector.multi_reduction <add>, %22, %cst_10 [1] : vector<16x128xf32> to vector<16xf32>
    %24 = vector.shape_cast %23 : vector<16xf32> to vector<16x1xf32>
    %25 = arith.subf %18, %24 : vector<16x1xf32>
    %26 = tpu.iota {dimensions = array<i32: 0>} : vector<16x1xi32>
    %c16_i32 = arith.constant 16 : i32
    %27 = arith.muli %arg0, %c16_i32 : i32
    %28 = vector.broadcast %27 : i32 to vector<16x1xi32>
    %29 = arith.addi %26, %28 : vector<16x1xi32>
    %c16_i32_11 = arith.constant 16 : i32
    %30 = vector.broadcast %c16_i32_11 : i32 to vector<16x1xi32>
    %31 = arith.cmpi slt, %29, %30 : vector<16x1xi32>
    %cst_12 = arith.constant 0.000000e+00 : f32
    %32 = vector.broadcast %cst_12 : f32 to vector<16x1xf32>
    %33 = arith.select %31, %25, %32 : vector<16x1xi1>, vector<16x1xf32>
    %c0_13 = arith.constant 0 : index
    %c0_14 = arith.constant 0 : index
    %34 = vector.load %arg5[%c0_13, %c0_14] : memref<16x1xf32, #tpu.memory_space<vmem>>, vector<16x1xf32>
    tpu.vector_store %arg5[%c0_13, %c0_14], %33 {strides = array<i32>} : memref<16x1xf32, #tpu.memory_space<vmem>>, vector<16x1xf32>,
    return
  }
  func.func @transform_0(%arg0: i32) -> (i32, i32) {
    %c0_i32 = arith.constant 0 : i32
    %c0_i32_0 = arith.constant 0 : i32
    return %arg0, %c0_i32 : i32, i32
  }
  func.func @transform_1(%arg0: i32) -> (i32, i32) {
    %c0_i32 = arith.constant 0 : i32
    %c0_i32_0 = arith.constant 0 : i32
    return %arg0, %c0_i32 : i32, i32
  }
  func.func @transform_2(%arg0: i32) -> (i32, i32) {
    %c0_i32 = arith.constant 0 : i32
    %c0_i32_0 = arith.constant 0 : i32
    %c0_i32_1 = arith.constant 0 : i32
    return %c0_i32, %c0_i32_0 : i32, i32
  }
  func.func @transform_3(%arg0: i32) -> (i32, i32) {
    %c0_i32 = arith.constant 0 : i32
    %c0_i32_0 = arith.constant 0 : i32
    return %arg0, %c0_i32 : i32, i32
  }
  func.func @transform_4(%arg0: i32) -> (i32, i32) {
    %c0_i32 = arith.constant 0 : i32
    %c0_i32_0 = arith.constant 0 : i32
    return %arg0, %c0_i32 : i32, i32
  }
}

</mosaic_0001>

<llo_original>
// kernel: tpu_custom_call.1
$region0: #{tpu_custom_call.1}
  #allocation0 [shape = 'u32[]', space=smem, size = 0x4, offset = 0x4, fixed_abs, tag = 'smem constant byte address 0x4 - core index']
  #allocation1 [shape = 'u32[144,128]{1,0:T(1,128)}', space=vmem, size = 0x12000, scoped, tag = 'internal scratch']
  %s0 = inlined_call_operand.vmem [shape: s32[16,1], index: 0, kind: input, shape index: {}]
  %s1 = inlined_call_operand.vmem [shape: s32[16,1], index: 1, kind: input, shape index: {}]
  %s2 = inlined_call_operand.hbm [shape: f32[128,128], index: 2, kind: input, shape index: {}]
  %s3 = inlined_call_operand.hbm [shape: f32[16,128], index: 3, kind: output, shape index: {0}]
  %s4 = inlined_call_operand.vmem [shape: f32[16,1], index: 4, kind: output, shape index: {1}]
  %5 = xla_tuple %s3, %s4
  %s6 = sld [smem:[#allocation0]]
  $region34: #{tpu_custom_call.1} parent=0
    _
  %s8 = ssub.s32 1, %s6
  %s9 = scalar_select 0, %s8, %s6
  $region1: #{tpu_custom_call.1} parent=0
    #allocation2 [shape = 'u8[65536]{0}', space=vmem, size = 0x10000, scoped, tag = 'input window, operand 2, single buffered']
    #allocation3 [shape = 's32[1]{0}', space=sflag, size = 0x4, scoped, tag = 'scoped memory for tpu_custom_call.1']
    #allocation4 [shape = 's32[1]{0}', space=sflag, size = 0x4, scoped, tag = 'scoped memory for tpu_custom_call.1']
    #allocation5 [shape = 'u8[8192]{0}', space=vmem, size = 0x2000, scoped, tag = 'output window, operand 0, single buffered']
    %10 = vsyncpa [#allocation3], 0
    %11 = vsyncpa [#allocation4], 0
    // Predicated region
    $region2: #{tpu_custom_call.1} parent=1 // pred_check
      _
    $region3: #{tpu_custom_call.1} parent=1 // pred_check_branch
      %13 = sbr.rel (0) target = $region5
    $region4: #{tpu_custom_call.1} parent=1 // pred_region
      _
    $region5: #{tpu_custom_call.1} parent=1 // pred_fallthru
      _
    // Predicated region
    $region6: #{tpu_custom_call.1} parent=1 // pred_check
      _
    $region7: #{tpu_custom_call.1} parent=1 // pred_check_branch
      %15 = sbr.rel (0) target = $region9
    $region8: #{tpu_custom_call.1} parent=1 // pred_region
      _
    $region9: #{tpu_custom_call.1} parent=1 // pred_fallthru
      _
    // Predicated region
    $region10: #{tpu_custom_call.1} parent=1 // pred_check
      _
    $region11: #{tpu_custom_call.1} parent=1 // pred_check_branch
      %17 = sbr.rel (0) target = $region13
    $region12: #{tpu_custom_call.1} parent=1 // pred_region
      %s19 = ssub.s32 2048, 2048
      %20 = vsyncadd [#allocation3], %s19
      %s21 = sshll.u32 [#allocation2], 4
      %s22 = int_to_ptr.vmem [resolvable:$true] %s21
      %27 = dma.hbm_to_vmem [thread:$0]  %s2, 2048, %s22, [#allocation3], 128, 128, 8
    $region13: #{tpu_custom_call.1} parent=1 // pred_fallthru
      _
    // Predicated region
    $region14: #{tpu_custom_call.1} parent=1 // pred_check
      _
    $region15: #{tpu_custom_call.1} parent=1 // pred_check_branch
      %29 = sbr.rel (0) target = $region17
    $region16: #{tpu_custom_call.1} parent=1 // pred_region
      %30 = dma.done [#allocation3], 2048
    $region17: #{tpu_custom_call.1} parent=1 // pred_fallthru
      _
    %v31 = vld [vmem:[%s0] sm:$0xff]
    %v32 = vld [vmem:[%s0 + $0x8] sm:$0xff]
    %v33 = vld [vmem:[#allocation2] sm:$0xff]
    %v34 = vld [vmem:[#allocation2 + $0x8] sm:$0xff]
    %v35 = vld [vmem:[#allocation2 + $0x10] sm:$0xff]
    %v36 = vld [vmem:[#allocation2 + $0x18] sm:$0xff]
    %v37 = vld [vmem:[#allocation2 + $0x20] sm:$0xff]
    %v38 = vld [vmem:[#allocation2 + $0x28] sm:$0xff]
    %v39 = vld [vmem:[#allocation2 + $0x30] sm:$0xff]
    %v40 = vld [vmem:[#allocation2 + $0x38] sm:$0xff]
    %v41 = vld [vmem:[#allocation2 + $0x40] sm:$0xff]
    %v42 = vld [vmem:[#allocation2 + $0x48] sm:$0xff]
    %v43 = vld [vmem:[#allocation2 + $0x50] sm:$0xff]
    %v44 = vld [vmem:[#allocation2 + $0x58] sm:$0xff]
    %v45 = vld [vmem:[#allocation2 + $0x60] sm:$0xff]
    %v46 = vld [vmem:[#allocation2 + $0x68] sm:$0xff]
    %v47 = vld [vmem:[#allocation2 + $0x70] sm:$0xff]
    %v48 = vld [vmem:[#allocation2 + $0x78] sm:$0xff]
    %v49 = vlaneseq
    %v50 = vand.u32 %v49, 127
    %51 = vset.pattern.permute.xlu0 0
    %52 = vperm.xlu0 %51, %v31
    %v53 = vpop.permute.xlu0 %52
    %54 = vset.pattern.permute.xlu0 0
    %55 = vperm.xlu0 %54, %v32
    %v56 = vpop.permute.xlu0 %55
    %vm57 = vcmp.eq.s32.totalorder %v50, %v53
    %vm58 = vcmp.eq.s32.totalorder %v50, %v56
    %v59 = vsel %vm57, 1, 0
    %v60 = vsel %vm58, 1, 0
    %v61 = vcvt.s32.f32 %v59
    %v62 = vcvt.s32.f32 %v60
    %63 = vmatprep.subr.mxu0 0.0
    %v64 = vand.u32 %v48, 4294901760
    %65 = vmatpush1.msra.mxu0 %v64
    %66 = vmatprep.subr.mxu0 0.0
    %v67 = vand.u32 %v47, 4294901760
    %68 = vmatpush1.msra.mxu0 %v67
    %69 = vmatprep.subr.mxu0 0.0
    %v70 = vand.u32 %v46, 4294901760
    %71 = vmatpush1.msra.mxu0 %v70
    %72 = vmatprep.subr.mxu0 0.0
    %v73 = vand.u32 %v45, 4294901760
    %74 = vmatpush1.msra.mxu0 %v73
    %75 = vmatprep.subr.mxu0 0.0
    %v76 = vand.u32 %v44, 4294901760
    %77 = vmatpush1.msra.mxu0 %v76
    %78 = vmatprep.subr.mxu0 0.0
    %v79 = vand.u32 %v43, 4294901760
    %80 = vmatpush1.msra.mxu0 %v79
    %81 = vmatprep.subr.mxu0 0.0
    %v82 = vand.u32 %v42, 4294901760
    %83 = vmatpush1.msra.mxu0 %v82
    %84 = vmatprep.subr.mxu0 0.0
    %v85 = vand.u32 %v41, 4294901760
    %86 = vmatpush1.msra.mxu0 %v85
    %87 = vmatprep.subr.mxu0 0.0
    %v88 = vand.u32 %v40, 4294901760
    %89 = vmatpush1.msra.mxu0 %v88
    %90 = vmatprep.subr.mxu0 0.0
    %v91 = vand.u32 %v39, 4294901760
    %92 = vmatpush1.msra.mxu0 %v91
    %93 = vmatprep.subr.mxu0 0.0
    %v94 = vand.u32 %v38, 4294901760
    %95 = vmatpush1.msra.mxu0 %v94
    %96 = vmatprep.subr.mxu0 0.0
    %v97 = vand.u32 %v37, 4294901760
    %98 = vmatpush1.msra.mxu0 %v97
    %99 = vmatprep.subr.mxu0 0.0
    %v100 = vand.u32 %v36, 4294901760
    %101 = vmatpush1.msra.mxu0 %v100
    %102 = vmatprep.subr.mxu0 0.0
    %v103 = vand.u32 %v35, 4294901760
    %104 = vmatpush1.msra.mxu0 %v103
    %105 = vmatprep.subr.mxu0 0.0
    %v106 = vand.u32 %v34, 4294901760
    %107 = vmatpush1.msra.mxu0 %v106
    %108 = vmatprep.subr.mxu0 0.0
    %v109 = vand.u32 %v33, 4294901760
    %110 = vmatpush1.msra.mxu0 %v109
    %111 = vmatprep.subr.mxu0 0.0
    %112 = vmatpush2.msra.mxu0 0.0
    %113 = vmatprep.subr.mxu0 0.0
    %114 = vmatpush2.msra.mxu0 0.0
    %115 = vmatprep.subr.mxu0 0.0
    %116 = vmatpush2.msra.mxu0 0.0
    %117 = vmatprep.subr.mxu0 0.0
    %118 = vmatpush2.msra.mxu0 0.0
    %119 = vmatprep.subr.mxu0 0.0
    %120 = vmatpush2.msra.mxu0 0.0
    %121 = vmatprep.subr.mxu0 0.0
    %122 = vmatpush2.msra.mxu0 0.0
    %123 = vmatprep.subr.mxu0 0.0
    %124 = vmatpush2.msra.mxu0 0.0
    %125 = vmatprep.subr.mxu0 0.0
    %126 = vmatpush2.msra.mxu0 0.0
    %127 = vmatprep.subr.mxu0 0.0
    %128 = vmatpush2.msra.mxu0 0.0
    %129 = vmatprep.subr.mxu0 0.0
    %130 = vmatpush2.msra.mxu0 0.0
    %131 = vmatprep.subr.mxu0 0.0
    %132 = vmatpush2.msra.mxu0 0.0
    %133 = vmatprep.subr.mxu0 0.0
    %134 = vmatpush2.msra.mxu0 0.0
    %135 = vmatprep.subr.mxu0 0.0
    %136 = vmatpush2.msra.mxu0 0.0
    %137 = vmatprep.subr.mxu0 0.0
    %138 = vmatpush2.msra.mxu0 0.0
    %139 = vmatprep.subr.mxu0 0.0
    %140 = vmatpush2.msra.mxu0 0.0
    %141 = vmatprep.subr.mxu0 0.0
    %142 = vmatpush2.msra.mxu0 0.0
    %143 = vmatprep.mubr.f32.mxu0 0.0
    %v144 = vand.u32 %v61, 4294901760
    %v145 = vsub.f32 %v61, %v144
    %v146 = vand.u32 %v145, 4294901760
    %v147 = vsub.f32 %v145, %v146
    %v148 = vand.u32 %v147, 4294901760
    %149 = vmatmul.mubr.f32.gmra.mxu0 %v148
    %v150 = vpop.f32.mrf.mxu0
    %v151 = vadd.f32 0.0, %v150
    %v152 = vpop.f32.mrf.mxu0
    %153 = vmatprep.mubr.f32.mxu0 0.0
    %v154 = vand.u32 %v62, 4294901760
    %v155 = vsub.f32 %v62, %v154
    %v156 = vand.u32 %v155, 4294901760
    %v157 = vsub.f32 %v155, %v156
    %v158 = vand.u32 %v157, 4294901760
    %159 = vmatmul.mubr.f32.gmra.mxu0 %v158
    %v160 = vpop.f32.mrf.mxu0
    %v161 = vadd.f32 0.0, %v160
    %v162 = vpop.f32.mrf.mxu0
    %163 = vdwg.mxu0
    %164 = vmatprep.subr.mxu0 0.0
    %v165 = vand.u32 %v48, 4294901760
    %v166 = vsub.f32 %v48, %v165
    %v167 = vand.u32 %v166, 4294901760
    %v168 = vsub.f32 %v166, %v167
    %v169 = vand.u32 %v168, 4294901760
    %170 = vmatpush1.msra.mxu0 %v169
    %171 = vmatprep.subr.mxu0 0.0
    %v172 = vand.u32 %v47, 4294901760
    %v173 = vsub.f32 %v47, %v172
    %v174 = vand.u32 %v173, 4294901760
    %v175 = vsub.f32 %v173, %v174
    %v176 = vand.u32 %v175, 4294901760
    %177 = vmatpush1.msra.mxu0 %v176
    %178 = vmatprep.subr.mxu0 0.0
    %v179 = vand.u32 %v46, 4294901760
    %v180 = vsub.f32 %v46, %v179
    %v181 = vand.u32 %v180, 4294901760
    %v182 = vsub.f32 %v180, %v181
    %v183 = vand.u32 %v182, 4294901760
    %184 = vmatpush1.msra.mxu0 %v183
    %185 = vmatprep.subr.mxu0 0.0
    %v186 = vand.u32 %v45, 4294901760
    %v187 = vsub.f32 %v45, %v186
    %v188 = vand.u32 %v187, 4294901760
    %v189 = vsub.f32 %v187, %v188
    %v190 = vand.u32 %v189, 4294901760
    %191 = vmatpush1.msra.mxu0 %v190
    %192 = vmatprep.subr.mxu0 0.0
    %v193 = vand.u32 %v44, 4294901760
    %v194 = vsub.f32 %v44, %v193
    %v195 = vand.u32 %v194, 4294901760
    %v196 = vsub.f32 %v194, %v195
    %v197 = vand.u32 %v196, 4294901760
    %198 = vmatpush1.msra.mxu0 %v197
    %199 = vmatprep.subr.mxu0 0.0
    %v200 = vand.u32 %v43, 4294901760
    %v201 = vsub.f32 %v43, %v200
    %v202 = vand.u32 %v201, 4294901760
    %v203 = vsub.f32 %v201, %v202
    %v204 = vand.u32 %v203, 4294901760
    %205 = vmatpush1.msra.mxu0 %v204
    %206 = vmatprep.subr.mxu0 0.0
    %v207 = vand.u32 %v42, 4294901760
    %v208 = vsub.f32 %v42, %v207
    %v209 = vand.u32 %v208, 4294901760
    %v210 = vsub.f32 %v208, %v209
    %v211 = vand.u32 %v210, 4294901760
    %212 = vmatpush1.msra.mxu0 %v211
    %213 = vmatprep.subr.mxu0 0.0
    %v214 = vand.u32 %v41, 4294901760
    %v215 = vsub.f32 %v41, %v214
    %v216 = vand.u32 %v215, 4294901760
    %v217 = vsub.f32 %v215, %v216
    %v218 = vand.u32 %v217, 4294901760
    %219 = vmatpush1.msra.mxu0 %v218
    %220 = vmatprep.subr.mxu0 0.0
    %v221 = vand.u32 %v40, 4294901760
    %v222 = vsub.f32 %v40, %v221
    %v223 = vand.u32 %v222, 4294901760
    %v224 = vsub.f32 %v222, %v223
    %v225 = vand.u32 %v224, 4294901760
    %226 = vmatpush1.msra.mxu0 %v225
    %227 = vmatprep.subr.mxu0 0.0
    %v228 = vand.u32 %v39, 4294901760
    %v229 = vsub.f32 %v39, %v228
    %v230 = vand.u32 %v229, 4294901760
    %v231 = vsub.f32 %v229, %v230
    %v232 = vand.u32 %v231, 4294901760
    %233 = vmatpush1.msra.mxu0 %v232
    %234 = vmatprep.subr.mxu0 0.0
    %v235 = vand.u32 %v38, 4294901760
    %v236 = vsub.f32 %v38, %v235
    %v237 = vand.u32 %v236, 4294901760
    %v238 = vsub.f32 %v236, %v237
    %v239 = vand.u32 %v238, 4294901760
    %240 = vmatpush1.msra.mxu0 %v239
    %241 = vmatprep.subr.mxu0 0.0
    %v242 = vand.u32 %v37, 4294901760
    %v243 = vsub.f32 %v37, %v242
    %v244 = vand.u32 %v243, 4294901760
    %v245 = vsub.f32 %v243, %v244
    %v246 = vand.u32 %v245, 4294901760
    %247 = vmatpush1.msra.mxu0 %v246
    %248 = vmatprep.subr.mxu0 0.0
    %v249 = vand.u32 %v36, 4294901760
    %v250 = vsub.f32 %v36, %v249
    %v251 = vand.u32 %v250, 4294901760
    %v252 = vsub.f32 %v250, %v251
    %v253 = vand.u32 %v252, 4294901760
    %254 = vmatpush1.msra.mxu0 %v253
    %255 = vmatprep.subr.mxu0 0.0
    %v256 = vand.u32 %v35, 4294901760
    %v257 = vsub.f32 %v35, %v256
    %v258 = vand.u32 %v257, 4294901760
    %v259 = vsub.f32 %v257, %v258
    %v260 = vand.u32 %v259, 4294901760
    %261 = vmatpush1.msra.mxu0 %v260
    %262 = vmatprep.subr.mxu0 0.0
    %v263 = vand.u32 %v34, 4294901760
    %v264 = vsub.f32 %v34, %v263
    %v265 = vand.u32 %v264, 4294901760
    %v266 = vsub.f32 %v264, %v265
    %v267 = vand.u32 %v266, 4294901760
    %268 = vmatpush1.msra.mxu0 %v267
    %269 = vmatprep.subr.mxu0 0.0
    %v270 = vand.u32 %v33, 4294901760
    %v271 = vsub.f32 %v33, %v270
    %v272 = vand.u32 %v271, 4294901760
    %v273 = vsub.f32 %v271, %v272
    %v274 = vand.u32 %v273, 4294901760
    %275 = vmatpush1.msra.mxu0 %v274
    %276 = vmatprep.subr.mxu0 0.0
    %277 = vmatpush2.msra.mxu0 0.0
    %278 = vmatprep.subr.mxu0 0.0
    %279 = vmatpush2.msra.mxu0 0.0
    %280 = vmatprep.subr.mxu0 0.0
    %281 = vmatpush2.msra.mxu0 0.0
    %282 = vmatprep.subr.mxu0 0.0
    %283 = vmatpush2.msra.mxu0 0.0
    %284 = vmatprep.subr.mxu0 0.0
    %285 = vmatpush2.msra.mxu0 0.0
    %286 = vmatprep.subr.mxu0 0.0
    %287 = vmatpush2.msra.mxu0 0.0
    %288 = vmatprep.subr.mxu0 0.0
    %289 = vmatpush2.msra.mxu0 0.0
    %290 = vmatprep.subr.mxu0 0.0
    %291 = vmatpush2.msra.mxu0 0.0
    %292 = vmatprep.subr.mxu0 0.0
    %293 = vmatpush2.msra.mxu0 0.0
    %294 = vmatprep.subr.mxu0 0.0
    %295 = vmatpush2.msra.mxu0 0.0
    %296 = vmatprep.subr.mxu0 0.0
    %297 = vmatpush2.msra.mxu0 0.0
    %298 = vmatprep.subr.mxu0 0.0
    %299 = vmatpush2.msra.mxu0 0.0
    %300 = vmatprep.subr.mxu0 0.0
    %301 = vmatpush2.msra.mxu0 0.0
    %302 = vmatprep.subr.mxu0 0.0
    %303 = vmatpush2.msra.mxu0 0.0
    %304 = vmatprep.subr.mxu0 0.0
    %305 = vmatpush2.msra.mxu0 0.0
    %306 = vmatprep.subr.mxu0 0.0
    %307 = vmatpush2.msra.mxu0 0.0
    %308 = vmatprep.mubr.f32.mxu0 0.0
    %v309 = vand.u32 %v61, 4294901760
    %310 = vmatmul.mubr.f32.gmra.mxu0 %v309
    %v311 = vpop.f32.mrf.mxu0
    %v312 = vadd.f32 %v151, %v311
    %v313 = vpop.f32.mrf.mxu0
    %314 = vmatprep.mubr.f32.mxu0 0.0
    %v315 = vand.u32 %v62, 4294901760
    %316 = vmatmul.mubr.f32.gmra.mxu0 %v315
    %v317 = vpop.f32.mrf.mxu0
    %v318 = vadd.f32 %v161, %v317
    %v319 = vpop.f32.mrf.mxu0
    %320 = vdwg.mxu0
    %321 = vmatprep.subr.mxu0 0.0
    %v322 = vand.u32 %v48, 4294901760
    %v323 = vsub.f32 %v48, %v322
    %324 = vmatpush1.msra.mxu0 %v323
    %325 = vmatprep.subr.mxu0 0.0
    %v326 = vand.u32 %v47, 4294901760
    %v327 = vsub.f32 %v47, %v326
    %328 = vmatpush1.msra.mxu0 %v327
    %329 = vmatprep.subr.mxu0 0.0
    %v330 = vand.u32 %v46, 4294901760
    %v331 = vsub.f32 %v46, %v330
    %332 = vmatpush1.msra.mxu0 %v331
    %333 = vmatprep.subr.mxu0 0.0
    %v334 = vand.u32 %v45, 4294901760
    %v335 = vsub.f32 %v45, %v334
    %336 = vmatpush1.msra.mxu0 %v335
    %337 = vmatprep.subr.mxu0 0.0
    %v338 = vand.u32 %v44, 4294901760
    %v339 = vsub.f32 %v44, %v338
    %340 = vmatpush1.msra.mxu0 %v339
    %341 = vmatprep.subr.mxu0 0.0
    %v342 = vand.u32 %v43, 4294901760
    %v343 = vsub.f32 %v43, %v342
    %344 = vmatpush1.msra.mxu0 %v343
    %345 = vmatprep.subr.mxu0 0.0
    %v346 = vand.u32 %v42, 4294901760
    %v347 = vsub.f32 %v42, %v346
    %348 = vmatpush1.msra.mxu0 %v347
    %349 = vmatprep.subr.mxu0 0.0
    %v350 = vand.u32 %v41, 4294901760
    %v351 = vsub.f32 %v41, %v350
    %352 = vmatpush1.msra.mxu0 %v351
    %353 = vmatprep.subr.mxu0 0.0
    %v354 = vand.u32 %v40, 4294901760
    %v355 = vsub.f32 %v40, %v354
    %356 = vmatpush1.msra.mxu0 %v355
    %357 = vmatprep.subr.mxu0 0.0
    %v358 = vand.u32 %v39, 4294901760
    %v359 = vsub.f32 %v39, %v358
    %360 = vmatpush1.msra.mxu0 %v359
    %361 = vmatprep.subr.mxu0 0.0
    %v362 = vand.u32 %v38, 4294901760
    %v363 = vsub.f32 %v38, %v362
    %364 = vmatpush1.msra.mxu0 %v363
    %365 = vmatprep.subr.mxu0 0.0
    %v366 = vand.u32 %v37, 4294901760
    %v367 = vsub.f32 %v37, %v366
    %368 = vmatpush1.msra.mxu0 %v367
    %369 = vmatprep.subr.mxu0 0.0
    %v370 = vand.u32 %v36, 4294901760
    %v371 = vsub.f32 %v36, %v370
    %372 = vmatpush1.msra.mxu0 %v371
    %373 = vmatprep.subr.mxu0 0.0
    %v374 = vand.u32 %v35, 4294901760
    %v375 = vsub.f32 %v35, %v374
    %376 = vmatpush1.msra.mxu0 %v375
    %377 = vmatprep.subr.mxu0 0.0
    %v378 = vand.u32 %v34, 4294901760
    %v379 = vsub.f32 %v34, %v378
    %380 = vmatpush1.msra.mxu0 %v379
    %381 = vmatprep.subr.mxu0 0.0
    %v382 = vand.u32 %v33, 4294901760
    %v383 = vsub.f32 %v33, %v382
    %384 = vmatpush1.msra.mxu0 %v383
    %385 = vmatprep.subr.mxu0 0.0
    %386 = vmatpush2.msra.mxu0 0.0
    %387 = vmatprep.subr.mxu0 0.0
    %388 = vmatpush2.msra.mxu0 0.0
    %389 = vmatprep.subr.mxu0 0.0
    %390 = vmatpush2.msra.mxu0 0.0
    %391 = vmatprep.subr.mxu0 0.0
    %392 = vmatpush2.msra.mxu0 0.0
    %393 = vmatprep.subr.mxu0 0.0
    %394 = vmatpush2.msra.mxu0 0.0
    %395 = vmatprep.subr.mxu0 0.0
    %396 = vmatpush2.msra.mxu0 0.0
    %397 = vmatprep.subr.mxu0 0.0
    %398 = vmatpush2.msra.mxu0 0.0
    %399 = vmatprep.subr.mxu0 0.0
    %400 = vmatpush2.msra.mxu0 0.0
    %401 = vmatprep.subr.mxu0 0.0
    %402 = vmatpush2.msra.mxu0 0.0
    %403 = vmatprep.subr.mxu0 0.0
    %404 = vmatpush2.msra.mxu0 0.0
    %405 = vmatprep.subr.mxu0 0.0
    %406 = vmatpush2.msra.mxu0 0.0
    %407 = vmatprep.subr.mxu0 0.0
    %408 = vmatpush2.msra.mxu0 0.0
    %409 = vmatprep.subr.mxu0 0.0
    %410 = vmatpush2.msra.mxu0 0.0
    %411 = vmatprep.subr.mxu0 0.0
    %412 = vmatpush2.msra.mxu0 0.0
    %413 = vmatprep.subr.mxu0 0.0
    %414 = vmatpush2.msra.mxu0 0.0
    %415 = vmatprep.subr.mxu0 0.0
    %416 = vmatpush2.msra.mxu0 0.0
    %417 = vmatprep.mubr.f32.mxu0 0.0
    %v418 = vand.u32 %v61, 4294901760
    %v419 = vsub.f32 %v61, %v418
    %420 = vmatmul.mubr.f32.gmra.mxu0 %v419
    %v421 = vpop.f32.mrf.mxu0
    %v422 = vadd.f32 %v312, %v421
    %v423 = vpop.f32.mrf.mxu0
    %424 = vmatprep.mubr.f32.mxu0 0.0
    %v425 = vand.u32 %v62, 4294901760
    %v426 = vsub.f32 %v62, %v425
    %427 = vmatmul.mubr.f32.gmra.mxu0 %v426
    %v428 = vpop.f32.mrf.mxu0
    %v429 = vadd.f32 %v318, %v428
    %v430 = vpop.f32.mrf.mxu0
    %431 = vdwg.mxu0
    %432 = vmatprep.subr.mxu0 0.0
    %v433 = vand.u32 %v48, 4294901760
    %434 = vmatpush1.msra.mxu0 %v433
    %435 = vmatprep.subr.mxu0 0.0
    %v436 = vand.u32 %v47, 4294901760
    %437 = vmatpush1.msra.mxu0 %v436
    %438 = vmatprep.subr.mxu0 0.0
    %v439 = vand.u32 %v46, 4294901760
    %440 = vmatpush1.msra.mxu0 %v439
    %441 = vmatprep.subr.mxu0 0.0
    %v442 = vand.u32 %v45, 4294901760
    %443 = vmatpush1.msra.mxu0 %v442
    %444 = vmatprep.subr.mxu0 0.0
    %v445 = vand.u32 %v44, 4294901760
    %446 = vmatpush1.msra.mxu0 %v445
    %447 = vmatprep.subr.mxu0 0.0
    %v448 = vand.u32 %v43, 4294901760
    %449 = vmatpush1.msra.mxu0 %v448
    %450 = vmatprep.subr.mxu0 0.0
    %v451 = vand.u32 %v42, 4294901760
    %452 = vmatpush1.msra.mxu0 %v451
    %453 = vmatprep.subr.mxu0 0.0
    %v454 = vand.u32 %v41, 4294901760
    %455 = vmatpush1.msra.mxu0 %v454
    %456 = vmatprep.subr.mxu0 0.0
    %v457 = vand.u32 %v40, 4294901760
    %458 = vmatpush1.msra.mxu0 %v457
    %459 = vmatprep.subr.mxu0 0.0
    %v460 = vand.u32 %v39, 4294901760
    %461 = vmatpush1.msra.mxu0 %v460
    %462 = vmatprep.subr.mxu0 0.0
    %v463 = vand.u32 %v38, 4294901760
    %464 = vmatpush1.msra.mxu0 %v463
    %465 = vmatprep.subr.mxu0 0.0
    %v466 = vand.u32 %v37, 4294901760
    %467 = vmatpush1.msra.mxu0 %v466
    %468 = vmatprep.subr.mxu0 0.0
    %v469 = vand.u32 %v36, 4294901760
    %470 = vmatpush1.msra.mxu0 %v469
    %471 = vmatprep.subr.mxu0 0.0
    %v472 = vand.u32 %v35, 4294901760
    %473 = vmatpush1.msra.mxu0 %v472
    %474 = vmatprep.subr.mxu0 0.0
    %v475 = vand.u32 %v34, 4294901760
    %476 = vmatpush1.msra.mxu0 %v475
    %477 = vmatprep.subr.mxu0 0.0
    %v478 = vand.u32 %v33, 4294901760
    %479 = vmatpush1.msra.mxu0 %v478
    %480 = vmatprep.subr.mxu0 0.0
    %481 = vmatpush2.msra.mxu0 0.0
    %482 = vmatprep.subr.mxu0 0.0
    %483 = vmatpush2.msra.mxu0 0.0
    %484 = vmatprep.subr.mxu0 0.0
    %485 = vmatpush2.msra.mxu0 0.0
    %486 = vmatprep.subr.mxu0 0.0
    %487 = vmatpush2.msra.mxu0 0.0
    %488 = vmatprep.subr.mxu0 0.0
    %489 = vmatpush2.msra.mxu0 0.0
    %490 = vmatprep.subr.mxu0 0.0
    %491 = vmatpush2.msra.mxu0 0.0
    %492 = vmatprep.subr.mxu0 0.0
    %493 = vmatpush2.msra.mxu0 0.0
    %494 = vmatprep.subr.mxu0 0.0
    %495 = vmatpush2.msra.mxu0 0.0
    %496 = vmatprep.subr.mxu0 0.0
    %497 = vmatpush2.msra.mxu0 0.0
    %498 = vmatprep.subr.mxu0 0.0
    %499 = vmatpush2.msra.mxu0 0.0
    %500 = vmatprep.subr.mxu0 0.0
    %501 = vmatpush2.msra.mxu0 0.0
    %502 = vmatprep.subr.mxu0 0.0
    %503 = vmatpush2.msra.mxu0 0.0
    %504 = vmatprep.subr.mxu0 0.0
    %505 = vmatpush2.msra.mxu0 0.0
    %506 = vmatprep.subr.mxu0 0.0
    %507 = vmatpush2.msra.mxu0 0.0
    %508 = vmatprep.subr.mxu0 0.0
    %509 = vmatpush2.msra.mxu0 0.0
    %510 = vmatprep.subr.mxu0 0.0
    %511 = vmatpush2.msra.mxu0 0.0
    %512 = vmatprep.mubr.f32.mxu0 0.0
    %v513 = vand.u32 %v61, 4294901760
    %v514 = vsub.f32 %v61, %v513
    %v515 = vand.u32 %v514, 4294901760
    %516 = vmatmul.mubr.f32.gmra.mxu0 %v515
    %v517 = vpop.f32.mrf.mxu0
    %v518 = vadd.f32 %v422, %v517
    %v519 = vpop.f32.mrf.mxu0
    %520 = vmatprep.mubr.f32.mxu0 0.0
    %v521 = vand.u32 %v62, 4294901760
    %v522 = vsub.f32 %v62, %v521
    %v523 = vand.u32 %v522, 4294901760
    %524 = vmatmul.mubr.f32.gmra.mxu0 %v523
    %v525 = vpop.f32.mrf.mxu0
    %v526 = vadd.f32 %v429, %v525
    %v527 = vpop.f32.mrf.mxu0
    %528 = vdwg.mxu0
    %529 = vmatprep.subr.mxu0 0.0
    %v530 = vand.u32 %v48, 4294901760
    %v531 = vsub.f32 %v48, %v530
    %v532 = vand.u32 %v531, 4294901760
    %533 = vmatpush1.msra.mxu0 %v532
    %534 = vmatprep.subr.mxu0 0.0
    %v535 = vand.u32 %v47, 4294901760
    %v536 = vsub.f32 %v47, %v535
    %v537 = vand.u32 %v536, 4294901760
    %538 = vmatpush1.msra.mxu0 %v537
    %539 = vmatprep.subr.mxu0 0.0
    %v540 = vand.u32 %v46, 4294901760
    %v541 = vsub.f32 %v46, %v540
    %v542 = vand.u32 %v541, 4294901760
    %543 = vmatpush1.msra.mxu0 %v542
    %544 = vmatprep.subr.mxu0 0.0
    %v545 = vand.u32 %v45, 4294901760
    %v546 = vsub.f32 %v45, %v545
    %v547 = vand.u32 %v546, 4294901760
    %548 = vmatpush1.msra.mxu0 %v547
    %549 = vmatprep.subr.mxu0 0.0
    %v550 = vand.u32 %v44, 4294901760
    %v551 = vsub.f32 %v44, %v550
    %v552 = vand.u32 %v551, 4294901760
    %553 = vmatpush1.msra.mxu0 %v552
    %554 = vmatprep.subr.mxu0 0.0
    %v555 = vand.u32 %v43, 4294901760
    %v556 = vsub.f32 %v43, %v555
    %v557 = vand.u32 %v556, 4294901760
    %558 = vmatpush1.msra.mxu0 %v557
    %559 = vmatprep.subr.mxu0 0.0
    %v560 = vand.u32 %v42, 4294901760
    %v561 = vsub.f32 %v42, %v560
    %v562 = vand.u32 %v561, 4294901760
    %563 = vmatpush1.msra.mxu0 %v562
    %564 = vmatprep.subr.mxu0 0.0
    %v565 = vand.u32 %v41, 4294901760
    %v566 = vsub.f32 %v41, %v565
    %v567 = vand.u32 %v566, 4294901760
    %568 = vmatpush1.msra.mxu0 %v567
    %569 = vmatprep.subr.mxu0 0.0
    %v570 = vand.u32 %v40, 4294901760
    %v571 = vsub.f32 %v40, %v570
    %v572 = vand.u32 %v571, 4294901760
    %573 = vmatpush1.msra.mxu0 %v572
    %574 = vmatprep.subr.mxu0 0.0
    %v575 = vand.u32 %v39, 4294901760
    %v576 = vsub.f32 %v39, %v575
    %v577 = vand.u32 %v576, 4294901760
    %578 = vmatpush1.msra.mxu0 %v577
    %579 = vmatprep.subr.mxu0 0.0
    %v580 = vand.u32 %v38, 4294901760
    %v581 = vsub.f32 %v38, %v580
    %v582 = vand.u32 %v581, 4294901760
    %583 = vmatpush1.msra.mxu0 %v582
    %584 = vmatprep.subr.mxu0 0.0
    %v585 = vand.u32 %v37, 4294901760
    %v586 = vsub.f32 %v37, %v585
    %v587 = vand.u32 %v586, 4294901760
    %588 = vmatpush1.msra.mxu0 %v587
    %589 = vmatprep.subr.mxu0 0.0
    %v590 = vand.u32 %v36, 4294901760
    %v591 = vsub.f32 %v36, %v590
    %v592 = vand.u32 %v591, 4294901760
    %593 = vmatpush1.msra.mxu0 %v592
    %594 = vmatprep.subr.mxu0 0.0
    %v595 = vand.u32 %v35, 4294901760
    %v596 = vsub.f32 %v35, %v595
    %v597 = vand.u32 %v596, 4294901760
    %598 = vmatpush1.msra.mxu0 %v597
    %599 = vmatprep.subr.mxu0 0.0
    %v600 = vand.u32 %v34, 4294901760
    %v601 = vsub.f32 %v34, %v600
    %v602 = vand.u32 %v601, 4294901760
    %603 = vmatpush1.msra.mxu0 %v602
    %604 = vmatprep.subr.mxu0 0.0
    %v605 = vand.u32 %v33, 4294901760
    %v606 = vsub.f32 %v33, %v605
    %v607 = vand.u32 %v606, 4294901760
    %608 = vmatpush1.msra.mxu0 %v607
    %609 = vmatprep.subr.mxu0 0.0
    %610 = vmatpush2.msra.mxu0 0.0
    %611 = vmatprep.subr.mxu0 0.0
    %612 = vmatpush2.msra.mxu0 0.0
    %613 = vmatprep.subr.mxu0 0.0
    %614 = vmatpush2.msra.mxu0 0.0
    %615 = vmatprep.subr.mxu0 0.0
    %616 = vmatpush2.msra.mxu0 0.0
    %617 = vmatprep.subr.mxu0 0.0
    %618 = vmatpush2.msra.mxu0 0.0
    %619 = vmatprep.subr.mxu0 0.0
    %620 = vmatpush2.msra.mxu0 0.0
    %621 = vmatprep.subr.mxu0 0.0
    %622 = vmatpush2.msra.mxu0 0.0
    %623 = vmatprep.subr.mxu0 0.0
    %624 = vmatpush2.msra.mxu0 0.0
    %625 = vmatprep.subr.mxu0 0.0
    %626 = vmatpush2.msra.mxu0 0.0
    %627 = vmatprep.subr.mxu0 0.0
    %628 = vmatpush2.msra.mxu0 0.0
    %629 = vmatprep.subr.mxu0 0.0
    %630 = vmatpush2.msra.mxu0 0.0
    %631 = vmatprep.subr.mxu0 0.0
    %632 = vmatpush2.msra.mxu0 0.0
    %633 = vmatprep.subr.mxu0 0.0
    %634 = vmatpush2.msra.mxu0 0.0
    %635 = vmatprep.subr.mxu0 0.0
    %636 = vmatpush2.msra.mxu0 0.0
    %637 = vmatprep.subr.mxu0 0.0
    %638 = vmatpush2.msra.mxu0 0.0
    %639 = vmatprep.subr.mxu0 0.0
    %640 = vmatpush2.msra.mxu0 0.0
    %641 = vmatprep.mubr.f32.mxu0 0.0
    %v642 = vand.u32 %v61, 4294901760
    %643 = vmatmul.mubr.f32.gmra.mxu0 %v642
    %v644 = vpop.f32.mrf.mxu0
    %v645 = vadd.f32 %v518, %v644
    %v646 = vpop.f32.mrf.mxu0
    %647 = vmatprep.mubr.f32.mxu0 0.0
    %v648 = vand.u32 %v62, 4294901760
    %649 = vmatmul.mubr.f32.gmra.mxu0 %v648
    %v650 = vpop.f32.mrf.mxu0
    %v651 = vadd.f32 %v526, %v650
    %v652 = vpop.f32.mrf.mxu0
    %653 = vdwg.mxu0
    %654 = vmatprep.subr.mxu0 0.0
    %v655 = vand.u32 %v48, 4294901760
    %656 = vmatpush1.msra.mxu0 %v655
    %657 = vmatprep.subr.mxu0 0.0
    %v658 = vand.u32 %v47, 4294901760
    %659 = vmatpush1.msra.mxu0 %v658
    %660 = vmatprep.subr.mxu0 0.0
    %v661 = vand.u32 %v46, 4294901760
    %662 = vmatpush1.msra.mxu0 %v661
    %663 = vmatprep.subr.mxu0 0.0
    %v664 = vand.u32 %v45, 4294901760
    %665 = vmatpush1.msra.mxu0 %v664
    %666 = vmatprep.subr.mxu0 0.0
    %v667 = vand.u32 %v44, 4294901760
    %668 = vmatpush1.msra.mxu0 %v667
    %669 = vmatprep.subr.mxu0 0.0
    %v670 = vand.u32 %v43, 4294901760
    %671 = vmatpush1.msra.mxu0 %v670
    %672 = vmatprep.subr.mxu0 0.0
    %v673 = vand.u32 %v42, 4294901760
    %674 = vmatpush1.msra.mxu0 %v673
    %675 = vmatprep.subr.mxu0 0.0
    %v676 = vand.u32 %v41, 4294901760
    %677 = vmatpush1.msra.mxu0 %v676
    %678 = vmatprep.subr.mxu0 0.0
    %v679 = vand.u32 %v40, 4294901760
    %680 = vmatpush1.msra.mxu0 %v679
    %681 = vmatprep.subr.mxu0 0.0
    %v682 = vand.u32 %v39, 4294901760
    %683 = vmatpush1.msra.mxu0 %v682
    %684 = vmatprep.subr.mxu0 0.0
    %v685 = vand.u32 %v38, 4294901760
    %686 = vmatpush1.msra.mxu0 %v685
    %687 = vmatprep.subr.mxu0 0.0
    %v688 = vand.u32 %v37, 4294901760
    %689 = vmatpush1.msra.mxu0 %v688
    %690 = vmatprep.subr.mxu0 0.0
    %v691 = vand.u32 %v36, 4294901760
    %692 = vmatpush1.msra.mxu0 %v691
    %693 = vmatprep.subr.mxu0 0.0
    %v694 = vand.u32 %v35, 4294901760
    %695 = vmatpush1.msra.mxu0 %v694
    %696 = vmatprep.subr.mxu0 0.0
    %v697 = vand.u32 %v34, 4294901760
    %698 = vmatpush1.msra.mxu0 %v697
    %699 = vmatprep.subr.mxu0 0.0
    %v700 = vand.u32 %v33, 4294901760
    %701 = vmatpush1.msra.mxu0 %v700
    %702 = vmatprep.subr.mxu0 0.0
    %703 = vmatpush2.msra.mxu0 0.0
    %704 = vmatprep.subr.mxu0 0.0
    %705 = vmatpush2.msra.mxu0 0.0
    %706 = vmatprep.subr.mxu0 0.0
    %707 = vmatpush2.msra.mxu0 0.0
    %708 = vmatprep.subr.mxu0 0.0
    %709 = vmatpush2.msra.mxu0 0.0
    %710 = vmatprep.subr.mxu0 0.0
    %711 = vmatpush2.msra.mxu0 0.0
    %712 = vmatprep.subr.mxu0 0.0
    %713 = vmatpush2.msra.mxu0 0.0
    %714 = vmatprep.subr.mxu0 0.0
    %715 = vmatpush2.msra.mxu0 0.0
    %716 = vmatprep.subr.mxu0 0.0
    %717 = vmatpush2.msra.mxu0 0.0
    %718 = vmatprep.subr.mxu0 0.0
    %719 = vmatpush2.msra.mxu0 0.0
    %720 = vmatprep.subr.mxu0 0.0
    %721 = vmatpush2.msra.mxu0 0.0
    %722 = vmatprep.subr.mxu0 0.0
    %723 = vmatpush2.msra.mxu0 0.0
    %724 = vmatprep.subr.mxu0 0.0
    %725 = vmatpush2.msra.mxu0 0.0
    %726 = vmatprep.subr.mxu0 0.0
    %727 = vmatpush2.msra.mxu0 0.0
    %728 = vmatprep.subr.mxu0 0.0
    %729 = vmatpush2.msra.mxu0 0.0
    %730 = vmatprep.subr.mxu0 0.0
    %731 = vmatpush2.msra.mxu0 0.0
    %732 = vmatprep.subr.mxu0 0.0
    %733 = vmatpush2.msra.mxu0 0.0
    %734 = vmatprep.mubr.f32.mxu0 0.0
    %v735 = vand.u32 %v61, 4294901760
    %736 = vmatmul.mubr.f32.gmra.mxu0 %v735
    %v737 = vpop.f32.mrf.mxu0
    %v738 = vadd.f32 %v645, %v737
    %v739 = vpop.f32.mrf.mxu0
    %740 = vmatprep.mubr.f32.mxu0 0.0
    %v741 = vand.u32 %v62, 4294901760
    %742 = vmatmul.mubr.f32.gmra.mxu0 %v741
    %v743 = vpop.f32.mrf.mxu0
    %v744 = vadd.f32 %v651, %v743
    %v745 = vpop.f32.mrf.mxu0
    %746 = vdwg.mxu0
    %747 = vst [vmem:[#allocation5] sm:$0xff] %v738
    %748 = vst [vmem:[#allocation5 + $0x8] sm:$0xff] %v744
    %v749 = vld [vmem:[%s1] sm:$0xff]
    %v750 = vld [vmem:[%s1 + $0x8] sm:$0xff]
    %751 = vmax.xlane.f32.xlu0 %v738
    %v752 = vpop.xlane.xlu0 %751
    %753 = vmax.xlane.f32.xlu0 %v744
    %v754 = vpop.xlane.xlu0 %753
    %v755 = vsub.f32 %v738, %v752
    %v756 = vsub.f32 %v744, %v754
    %v757 = vmul.f32 %v755, 1.442695
    %v758 = vpow.pop %v757
    %v759 = vmul.f32 %v756, 1.442695
    %v760 = vpow.pop %v759
    %761 = vadd.xlane.f32.xlu0 %v758
    %v762 = vpop.xlane.xlu0 %761
    %763 = vadd.xlane.f32.xlu0 %v760
    %v764 = vpop.xlane.xlu0 %763
    %v765 = vlog2.pop %v762
    %v766 = vmul.f32 %v765, 0.6931472
    %v767 = vlog2.pop %v764
    %v768 = vmul.f32 %v767, 0.6931472
    %v769 = vadd.f32 %v752, %v766
    %v770 = vadd.f32 %v754, %v768
    %771 = vset.pattern.permute.xlu0 0
    %772 = vperm.xlu0 %771, %v749
    %v773 = vpop.permute.xlu0 %772
    %774 = vset.pattern.permute.xlu0 0
    %775 = vperm.xlu0 %774, %v750
    %v776 = vpop.permute.xlu0 %775
    %vm777 = vcmp.eq.s32.totalorder %v50, %v773
    %vm778 = vcmp.eq.s32.totalorder %v50, %v776
    %v779 = vsel %vm777, %v738, 0.0
    %v780 = vsel %vm778, %v744, 0.0
    %781 = vadd.xlane.f32.xlu0 %v779
    %v782 = vpop.xlane.xlu0 %781
    %783 = vadd.xlane.f32.xlu0 %v780
    %v784 = vpop.xlane.xlu0 %783
    %v785 = vsub.f32 %v769, %v782
    %v786 = vsub.f32 %v770, %v784
    %v787 = vlaneseq
    %v788 = vshrl.u32 %v787, 7
    %v789 = vadd.s32 %v788, 8
    %s790 = smul.u32 0, 16
    %v791 = vstv %s790
    %v792 = vadd.s32 %v788, %v791
    %v793 = vadd.s32 %v789, %v791
    %vm794 = vcmp.lt.s32.totalorder %v792, 16
    %vm795 = vcmp.lt.s32.totalorder %v793, 16
    %v796 = vsel %vm794, %v785, 0.0
    %v797 = vsel %vm795, %v786, 0.0
    %vm798 = vcmask 7168
    %799 = vst.msk [vmem:[%s4] sm:$0xff] %vm798, %v796
    %800 = vst.msk [vmem:[%s4 + $0x8] sm:$0xff] %vm798, %v797
    // Predicated region
    $region18: #{tpu_custom_call.1} parent=1 // pred_check
      _
    $region19: #{tpu_custom_call.1} parent=1 // pred_check_branch
      %802 = sbr.rel (0) target = $region21
    $region20: #{tpu_custom_call.1} parent=1 // pred_region
      %s804 = ssub.s32 256, 256
      %805 = vsyncadd [#allocation4], %s804
      %s806 = sshll.u32 [#allocation5], 4
      %s807 = int_to_ptr.vmem [resolvable:$true] %s806
      %812 = dma.vmem_to_hbm [thread:$0]  %s807, 256, %s3, [#allocation4], 128, 128, 8
    $region21: #{tpu_custom_call.1} parent=1 // pred_fallthru
      _
    // Predicated region
    $region22: #{tpu_custom_call.1} parent=1 // pred_check
      _
    $region23: #{tpu_custom_call.1} parent=1 // pred_check_branch
      %814 = sbr.rel (0) target = $region25
    $region24: #{tpu_custom_call.1} parent=1 // pred_region
      _
    $region25: #{tpu_custom_call.1} parent=1 // pred_fallthru
      _
    // Predicated region
    $region26: #{tpu_custom_call.1} parent=1 // pred_check
      _
    $region27: #{tpu_custom_call.1} parent=1 // pred_check_branch
      %816 = sbr.rel (0) target = $region29
    $region28: #{tpu_custom_call.1} parent=1 // pred_region
      %817 = dma.done [#allocation4], 256
    $region29: #{tpu_custom_call.1} parent=1 // pred_fallthru
      _
    // Predicated region
    $region30: #{tpu_custom_call.1} parent=1 // pred_check
      _
    $region31: #{tpu_custom_call.1} parent=1 // pred_check_branch
      %819 = sbr.rel (0) target = $region33
    $region32: #{tpu_custom_call.1} parent=1 // pred_region
      _
    $region33: #{tpu_custom_call.1} parent=1 // pred_fallthru
      _
    %820 = vsyncpa [#allocation3], 1
    %821 = vsyncpa [#allocation4], 1

</llo_original>
